<compile_context>
chip_gen: v5e
topology: v5e:2x2
jax: 0.10.0
libtpu: 0.0.40
codegen_flags: <defaults>
</compile_context>

<pallas_src>
import functools

import jax
import jax.numpy as jnp
from jax import lax
from jax.experimental import pallas as pl
from jax.experimental.pallas import tpu as pltpu

GAMMA_NEG = 4.0
GAMMA_POS = 1.0
CLIP = 0.05
EPS = 1e-5


def _int_pow(base, n):
    """base**n for a non-negative Python int n using only VPU multiplies."""
    n = int(n)
    result = None
    acc = base
    while n > 0:
        if n & 1:
            result = acc if result is None else result * acc
        n >>= 1
        if n:
            acc = acc * acc
    return jnp.ones_like(base) if result is None else result


def _tree_sum(slabs):
    """Pairwise-sum a list of equal-shape arrays (better ILP than a chain)."""
    while len(slabs) > 1:
        nxt = [slabs[i] + slabs[i + 1] for i in range(0, len(slabs) - 1, 2)]
        if len(slabs) % 2:
            nxt.append(slabs[-1])
        slabs = nxt
    return slabs[0]


def _asl_kernel(x_ref, y_ref, out_ref, *, gamma_neg, gamma_pos, clip, eps,
                batch, tile_rows, binary_fast, needs_mask):
    x = x_ref[...].astype(jnp.float32)
    y = y_ref[...].astype(jnp.float32)

    xs_pos = jax.nn.sigmoid(x)
    xs_neg = 1.0 - xs_pos
    if clip is not None and clip > 0:
        xs_neg = jnp.minimum(xs_neg + clip, 1.0)

    if binary_fast:
        # Hard 0/1 labels + non-negative integer gammas:
        # fuse the two logs into one and replace pow with repeated squaring.
        y_pos = y > 0.5
        p = jnp.where(y_pos, xs_pos, xs_neg)
        loss = jnp.log(jnp.maximum(p, eps))
        if gamma_neg > 0 or gamma_pos > 0:
            base = 1.0 - p
            loss = loss * jnp.where(y_pos, _int_pow(base, gamma_pos),
                                    _int_pow(base, gamma_neg))
    else:
        # General path (soft labels / arbitrary gammas), matches the module.
        anti_y = 1.0 - y
        loss = (y * jnp.log(jnp.maximum(xs_pos, eps))
                + anti_y * jnp.log(jnp.maximum(xs_neg, eps)))
        if gamma_neg > 0 or gamma_pos > 0:
            base = 1.0 - xs_pos * y - xs_neg * anti_y
            expo = gamma_pos * y + gamma_neg * anti_y
            loss = loss * jnp.power(base, expo)

    if needs_mask:
        # Zero rows past the true batch on the (uneven) last tile.  The
        # compare is done on a (tb, 1) column and broadcast into the select.
        row = (pl.program_id(0) * tile_rows
               + lax.broadcasted_iota(jnp.int32, (tile_rows, 1), 0))
        loss = jnp.where(row < batch, loss, 0.0)

    # Per-tile partial sum folded into an (8, C) slab: static, tile-aligned
    # (8, C) slices + pure VPU adds (no XLU lane reduce, no masked scalar
    # store).  Tiny final reduction + scaling happen in the JAX wrapper.
    slabs = [loss[r * 8:(r + 1) * 8, :] for r in range(tile_rows // 8)]
    out_ref[...] = _tree_sum(slabs)[None]


def asymmetric_loss(x, y, gamma_neg=GAMMA_NEG, gamma_pos=GAMMA_POS,
                    clip=CLIP, eps=EPS, assume_binary_labels=True,
                    tile_rows=None):
    """x: [B, C] logits, y: [B, C] multi-label targets. Returns scalar f32."""
    assert x.shape == y.shape and x.ndim == 2
    B, C = x.shape

    binary_fast = (assume_binary_labels
                   and float(gamma_pos).is_integer()
                   and float(gamma_neg).is_integer()
                   and gamma_pos >= 0 and gamma_neg >= 0)

    # Batch tile: ~2 MiB of f32 per input tile (double-buffered by Pallas),
    # rows a multiple of 8 so blocks stay (8, 128)-aligned.
    if tile_rows is None:
        tb = max(8, ((2 << 20) // (C * 4)) // 8 * 8)
        tb = min(tb, 512)
    else:
        tb = max(8, (int(tile_rows) // 8) * 8)
    b_ceil8 = ((B + 7) // 8) * 8
    tb = min(tb, b_ceil8)

    num_tiles = pl.cdiv(B, tb)
    needs_mask = (num_tiles * tb) != B   # uneven grid: no host-side padding

    kernel = functools.partial(
        _asl_kernel,
        gamma_neg=gamma_neg, gamma_pos=gamma_pos, clip=clip, eps=eps,
        batch=B, tile_rows=tb, binary_fast=binary_fast, needs_mask=needs_mask)

    # 2 inputs x 2 pipeline buffers + ~6 temporaries + output, plus headroom.
    tile_bytes = tb * C * 4
    vmem_limit = int(min(48 << 20, max(16 << 20, 12 * tile_bytes + (2 << 20))))

    partials = pl.pallas_call(
        kernel,
        out_shape=jax.ShapeDtypeStruct((num_tiles, 8, C), jnp.float32),
        grid=(num_tiles,),
        in_specs=[
            pl.BlockSpec((tb, C), lambda i: (i, 0)),
            pl.BlockSpec((tb, C), lambda i: (i, 0)),
        ],
        out_specs=pl.BlockSpec((1, 8, C), lambda i: (i, 0, 0)),
        compiler_params=pltpu.CompilerParams(
            dimension_semantics=("parallel",),
            vmem_limit_bytes=vmem_limit),
    )(x, y)

    total = jnp.sum(partials)
    return (-total / jnp.float32(B)) / jnp.float32(C) * 1000.0


def _reference(x, y, gamma_neg=GAMMA_NEG, gamma_pos=GAMMA_POS,
               clip=CLIP, eps=EPS):
    x = x.astype(jnp.float32)
    y = y.astype(jnp.float32)
    anti_y = 1.0 - y
    xs_pos = jax.nn.sigmoid(x)
    xs_neg = jnp.minimum(1.0 - xs_pos + clip, 1.0)
    loss = y * jnp.log(jnp.maximum(xs_pos, eps)) \
        + anti_y * jnp.log(jnp.maximum(xs_neg, eps))
    w = jnp.power(1.0 - xs_pos * y - xs_neg * anti_y,
                  gamma_pos * y + gamma_neg * anti_y)
    loss = loss * w
    return (-jnp.sum(loss) / x.shape[0]) / y.shape[1] * 1000.0


if __name__ == "__main__":
    key = jax.random.PRNGKey(0)

    def make_inputs(k, B, C):
        kx, ky = jax.random.split(k)
        xx = jax.random.normal(kx, (B, C), dtype=jnp.float32) * 2.0
        yy = (jax.random.uniform(ky, (B, C)) > 0.7).astype(jnp.float32)
        return xx, yy

    # 1) batch not a multiple of 8 -> uneven grid + in-kernel row masking,
    #    binary-label fast path (default config).
    x1, y1 = make_inputs(jax.random.fold_in(key, 0), 20, 128)
    out1 = jax.block_until_ready(jax.jit(asymmetric_loss)(x1, y1))
    ref1 = _reference(x1, y1)
    assert jnp.allclose(out1, ref1, rtol=2e-4, atol=2e-4), (out1, ref1)

    # 2) multi-tile grid + general (soft-label / pow) path.
    x2, y2 = make_inputs(jax.random.fold_in(key, 1), 32, 256)
    f2 = jax.jit(functools.partial(asymmetric_loss, tile_rows=8,
                                   assume_binary_labels=False))
    out2 = jax.block_until_ready(f2(x2, y2))
    ref2 = _reference(x2, y2)
    assert jnp.allclose(out2, ref2, rtol=2e-4, atol=2e-4), (out2, ref2)

    print("KERNEL_OK")
</pallas_src>

<mosaic_0001>
module attributes {stable_mosaic.version = 11 : i64} {
  func.func @_asl_kernel(%arg0: i32, %arg1: memref<24x128xf32, #tpu.memory_space<vmem>>, %arg2: memref<24x128xf32, #tpu.memory_space<vmem>>, %arg3: memref<1x8x128xf32, #tpu.memory_space<vmem>>) attributes {dimension_semantics = [#tpu.dimension_semantics<parallel>], iteration_bounds = array<i64: 1>, scalar_prefetch = 0 : i64, scratch_operands = 0 : i64, tpu.core_type = #tpu.core_type<tc>, window_params = [{transform_indices = @transform_0, window_bounds = array<i64: 24, 128>}, {transform_indices = @transform_1, window_bounds = array<i64: 24, 128>}, {transform_indices = @transform_2, window_bounds = array<i64: 1, 8, 128>}]} {
    %c0 = arith.constant 0 : index
    %c0_0 = arith.constant 0 : index
    %0 = vector.load %arg1[%c0, %c0_0] : memref<24x128xf32, #tpu.memory_space<vmem>>, vector<24x128xf32>
    %c0_1 = arith.constant 0 : index
    %c0_2 = arith.constant 0 : index
    %1 = vector.load %arg2[%c0_1, %c0_2] : memref<24x128xf32, #tpu.memory_space<vmem>>, vector<24x128xf32>
    %2 = arith.negf %0 : vector<24x128xf32>
    %3 = math.exp %2 : vector<24x128xf32>
    %cst = arith.constant 1.000000e+00 : f32
    %4 = vector.broadcast %cst : f32 to vector<24x128xf32>
    %5 = arith.addf %4, %3 : vector<24x128xf32>
    %6 = arith.divf %4, %5 : vector<24x128xf32>
    %cst_3 = arith.constant 1.000000e+00 : f32
    %7 = vector.broadcast %cst_3 : f32 to vector<24x128xf32>
    %8 = arith.subf %7, %6 : vector<24x128xf32>
    %cst_4 = arith.constant 5.000000e-02 : f32
    %9 = vector.broadcast %cst_4 : f32 to vector<24x128xf32>
    %10 = arith.addf %8, %9 : vector<24x128xf32>
    %cst_5 = arith.constant 1.000000e+00 : f32
    %11 = vector.broadcast %cst_5 : f32 to vector<24x128xf32>
    %12 = arith.minimumf %10, %11 : vector<24x128xf32>
    %cst_6 = arith.constant 5.000000e-01 : f32
    %13 = vector.broadcast %cst_6 : f32 to vector<24x128xf32>
    %14 = arith.cmpf ogt, %1, %13 : vector<24x128xf32>
    %15 = arith.select %14, %6, %12 : vector<24x128xi1>, vector<24x128xf32>
    %cst_7 = arith.constant 9.99999974E-6 : f32
    %16 = vector.broadcast %cst_7 : f32 to vector<24x128xf32>
    %17 = arith.maximumf %15, %16 : vector<24x128xf32>
    %18 = math.log %17 : vector<24x128xf32>
    %cst_8 = arith.constant 1.000000e+00 : f32
    %19 = vector.broadcast %cst_8 : f32 to vector<24x128xf32>
    %20 = arith.subf %19, %15 : vector<24x128xf32>
    %21 = arith.mulf %20, %20 : vector<24x128xf32>
    %22 = arith.mulf %21, %21 : vector<24x128xf32>
    %23 = arith.select %14, %20, %22 : vector<24x128xi1>, vector<24x128xf32>
    %24 = arith.mulf %18, %23 : vector<24x128xf32>
    %c24_i32 = arith.constant 24 : i32
    %25 = arith.muli %arg0, %c24_i32 : i32
    %26 = tpu.iota {dimensions = array<i32: 0>} : vector<24x1xi32>
    %27 = vector.broadcast %25 : i32 to vector<24x1xi32>
    %28 = arith.addi %27, %26 : vector<24x1xi32>
    %c20_i32 = arith.constant 20 : i32
    %29 = vector.broadcast %c20_i32 : i32 to vector<24x1xi32>
    %30 = arith.cmpi slt, %28, %29 : vector<24x1xi32>
    %cst_9 = arith.constant 0.000000e+00 : f32
    %31 = vector.shape_cast %30 : vector<24x1xi1> to vector<24x1xi1>
    %32 = vector.broadcast %31 : vector<24x1xi1> to vector<24x128xi1>
    %33 = vector.broadcast %cst_9 : f32 to vector<24x128xf32>
    %34 = arith.select %32, %24, %33 : vector<24x128xi1>, vector<24x128xf32>
    %35 = vector.extract_strided_slice %34 {offsets = [0, 0], sizes = [8, 128], strides = [1, 1]} : vector<24x128xf32> to vector<8x128xf32>
    %36 = vector.extract_strided_slice %34 {offsets = [8, 0], sizes = [8, 128], strides = [1, 1]} : vector<24x128xf32> to vector<8x128xf32>
    %37 = vector.extract_strided_slice %34 {offsets = [16, 0], sizes = [8, 128], strides = [1, 1]} : vector<24x128xf32> to vector<8x128xf32>
    %38 = arith.addf %35, %36 : vector<8x128xf32>
    %39 = arith.addf %38, %37 : vector<8x128xf32>
    %40 = vector.shape_cast %39 : vector<8x128xf32> to vector<1x8x128xf32>
    %c0_10 = arith.constant 0 : index
    %c0_11 = arith.constant 0 : index
    %c0_12 = arith.constant 0 : index
    %41 = vector.load %arg3[%c0_10, %c0_11, %c0_12] : memref<1x8x128xf32, #tpu.memory_space<vmem>>, vector<1x8x128xf32>
    tpu.vector_store %arg3[%c0_10, %c0_11, %c0_12], %40 {strides = array<i32>} : memref<1x8x128xf32, #tpu.memory_space<vmem>>, vector<1x8x128xf32>,
    return
  }
  func.func @transform_0(%arg0: i32) -> (i32, i32) {
    %c0_i32 = arith.constant 0 : i32
    %c0_i32_0 = arith.constant 0 : i32
    return %arg0, %c0_i32 : i32, i32
  }
  func.func @transform_1(%arg0: i32) -> (i32, i32) {
    %c0_i32 = arith.constant 0 : i32
    %c0_i32_0 = arith.constant 0 : i32
    return %arg0, %c0_i32 : i32, i32
  }
  func.func @transform_2(%arg0: i32) -> (i32, i32, i32) {
    %c0_i32 = arith.constant 0 : i32
    %c0_i32_0 = arith.constant 0 : i32
    %c0_i32_1 = arith.constant 0 : i32
    return %arg0, %c0_i32, %c0_i32_0 : i32, i32, i32
  }
}

</mosaic_0001>

<llo_original>
// kernel: asymmetric_loss.1
$region0: #{asymmetric_loss.1}
  #allocation0 [shape = 'u32[]', space=smem, size = 0x4, offset = 0x4, fixed_abs, tag = 'smem constant byte address 0x4 - core index']
  #allocation1 [shape = 'u32[72,128]{1,0:T(1,128)}', space=vmem, size = 0x9000, scoped, tag = 'internal scratch']
  %s0 = inlined_call_operand.hbm [shape: f32[20,128], index: 0, kind: input, shape index: {}]
  %s1 = inlined_call_operand.hbm [shape: f32[20,128], index: 1, kind: input, shape index: {}]
  %s2 = inlined_call_operand.vmem [shape: f32[1,8,128], index: 2, kind: output, shape index: {}]
  %s3 = sld [smem:[#allocation0]]
  $region26: #{asymmetric_loss.1} parent=0
    _
  %s5 = ssub.s32 1, %s3
  %s6 = scalar_select 0, %s5, %s3
  $region1: #{asymmetric_loss.1} parent=0
    #allocation2 [shape = 'u8[12288]{0}', space=vmem, size = 0x3000, scoped, tag = 'input window, operand 0, single buffered']
    #allocation3 [shape = 's32[1]{0}', space=sflag, size = 0x4, scoped, tag = 'scoped memory for asymmetric_loss.1']
    #allocation4 [shape = 'u8[12288]{0}', space=vmem, size = 0x3000, scoped, tag = 'input window, operand 1, single buffered']
    #allocation5 [shape = 's32[1]{0}', space=sflag, size = 0x4, scoped, tag = 'scoped memory for asymmetric_loss.1']
    %7 = vsyncpa [#allocation3], 0
    %8 = vsyncpa [#allocation5], 0
    // Predicated region
    $region2: #{asymmetric_loss.1} parent=1 // pred_check
      _
    $region3: #{asymmetric_loss.1} parent=1 // pred_check_branch
      %10 = sbr.rel (0) target = $region5
    $region4: #{asymmetric_loss.1} parent=1 // pred_region
      %12 = vsyncadd [#allocation3], 0
      %s13 = sshll.u32 %s0, 4
      %s14 = int_to_ptr.hbm [resolvable:$true] %s13
      %s15 = sshll.u32 [#allocation2], 4
      %s16 = int_to_ptr.vmem [resolvable:$true] %s15
      %21 = dma.hbm_to_vmem [thread:$0]  %s14, 384, %s16, [#allocation3], 128, 128, 8
    $region5: #{asymmetric_loss.1} parent=1 // pred_fallthru
      _
    // Predicated region
    $region6: #{asymmetric_loss.1} parent=1 // pred_check
      _
    $region7: #{asymmetric_loss.1} parent=1 // pred_check_branch
      %23 = sbr.rel (0) target = $region9
    $region8: #{asymmetric_loss.1} parent=1 // pred_region
      %25 = vsyncadd [#allocation5], 0
      %s26 = sshll.u32 %s1, 4
      %s27 = int_to_ptr.hbm [resolvable:$true] %s26
      %s28 = sshll.u32 [#allocation4], 4
      %s29 = int_to_ptr.vmem [resolvable:$true] %s28
      %34 = dma.hbm_to_vmem [thread:$0]  %s27, 384, %s29, [#allocation5], 128, 128, 8
    $region9: #{asymmetric_loss.1} parent=1 // pred_fallthru
      _
    // Predicated region
    $region10: #{asymmetric_loss.1} parent=1 // pred_check
      _
    $region11: #{asymmetric_loss.1} parent=1 // pred_check_branch
      %36 = sbr.rel (0) target = $region13
    $region12: #{asymmetric_loss.1} parent=1 // pred_region
      %38 = dma.done [#allocation3], 384
    $region13: #{asymmetric_loss.1} parent=1 // pred_fallthru
      _
    // Predicated region
    $region14: #{asymmetric_loss.1} parent=1 // pred_check
      _
    $region15: #{asymmetric_loss.1} parent=1 // pred_check_branch
      %40 = sbr.rel (0) target = $region17
    $region16: #{asymmetric_loss.1} parent=1 // pred_region
      %42 = dma.done [#allocation5], 384
    $region17: #{asymmetric_loss.1} parent=1 // pred_fallthru
      _
    %v43 = vld [vmem:[#allocation2] sm:$0xff]
    %v44 = vld [vmem:[#allocation2 + $0x8] sm:$0xff]
    %v45 = vld [vmem:[#allocation2 + $0x10] sm:$0xff]
    %v46 = vld [vmem:[#allocation4] sm:$0xff]
    %v47 = vld [vmem:[#allocation4 + $0x8] sm:$0xff]
    %v48 = vld [vmem:[#allocation4 + $0x10] sm:$0xff]
    %v49 = vxor.u32 %v43, 2147483648
    %v50 = vxor.u32 %v44, 2147483648
    %v51 = vxor.u32 %v45, 2147483648
    %v52 = vmul.f32 %v49, 1.442695
    %v53 = vpow.pop %v52
    %v54 = vmul.f32 %v50, 1.442695
    %v55 = vpow.pop %v54
    %v56 = vmul.f32 %v51, 1.442695
    %v57 = vpow.pop %v56
    %v58 = vadd.f32 %v53, 1.0
    %v59 = vadd.f32 %v55, 1.0
    %v60 = vadd.f32 %v57, 1.0
    %v61 = vrcp.pop %v58
    %v62 = vmul.f32 %v58, %v61
    %v63 = vsub.f32 1.0, %v62
    %v64 = vmul.f32 %v61, %v63
    %v65 = vadd.f32 %v61, %v64
    %vm66 = vweird.f32 %v58
    %vm67 = vweird.f32 %v61
    %vm68 = vmor %vm66, %vm67
    %v69 = vsel %vm68, %v61, %v65
    %v70 = vand.u32 2147483647, %v58
    %vm71 = vcmp.eq.f32.partialorder %v70, 8.507059e+37
    %v72 = vand.u32 %v58, 2147483648
    %v73 = vor.u32 1.1754944e-38, %v72
    %v74 = vsel %vm71, %v73, %v69
    %v75 = vmul.f32 1.0, %v74
    %v76 = vrcp.pop %v59
    %v77 = vmul.f32 %v59, %v76
    %v78 = vsub.f32 1.0, %v77
    %v79 = vmul.f32 %v76, %v78
    %v80 = vadd.f32 %v76, %v79
    %vm81 = vweird.f32 %v59
    %vm82 = vweird.f32 %v76
    %vm83 = vmor %vm81, %vm82
    %v84 = vsel %vm83, %v76, %v80
    %v85 = vand.u32 2147483647, %v59
    %vm86 = vcmp.eq.f32.partialorder %v85, 8.507059e+37
    %v87 = vand.u32 %v59, 2147483648
    %v88 = vor.u32 1.1754944e-38, %v87
    %v89 = vsel %vm86, %v88, %v84
    %v90 = vmul.f32 1.0, %v89
    %v91 = vrcp.pop %v60
    %v92 = vmul.f32 %v60, %v91
    %v93 = vsub.f32 1.0, %v92
    %v94 = vmul.f32 %v91, %v93
    %v95 = vadd.f32 %v91, %v94
    %vm96 = vweird.f32 %v60
    %vm97 = vweird.f32 %v91
    %vm98 = vmor %vm96, %vm97
    %v99 = vsel %vm98, %v91, %v95
    %v100 = vand.u32 2147483647, %v60
    %vm101 = vcmp.eq.f32.partialorder %v100, 8.507059e+37
    %v102 = vand.u32 %v60, 2147483648
    %v103 = vor.u32 1.1754944e-38, %v102
    %v104 = vsel %vm101, %v103, %v99
    %v105 = vmul.f32 1.0, %v104
    %v106 = vsub.f32 1.0, %v75
    %v107 = vsub.f32 1.0, %v90
    %v108 = vsub.f32 1.0, %v105
    %v109 = vadd.f32 %v106, 0.05
    %v110 = vadd.f32 %v107, 0.05
    %v111 = vadd.f32 %v108, 0.05
    %v112 = vmin.f32 %v109, 1.0
    %v113 = vmin.f32 %v110, 1.0
    %v114 = vmin.f32 %v111, 1.0
    %vm115 = vcmp.gt.f32.partialorder %v46, 0.5
    %vm116 = vcmp.gt.f32.partialorder %v47, 0.5
    %vm117 = vcmp.gt.f32.partialorder %v48, 0.5
    %v118 = vsel %vm115, %v75, %v112
    %v119 = vsel %vm116, %v90, %v113
    %v120 = vsel %vm117, %v105, %v114
    %v121 = vmax.f32 %v118, 1e-05
    %v122 = vmax.f32 %v119, 1e-05
    %v123 = vmax.f32 %v120, 1e-05
    %v124 = vlog2.pop %v121
    %v125 = vmul.f32 %v124, 0.6931472
    %v126 = vlog2.pop %v122
    %v127 = vmul.f32 %v126, 0.6931472
    %v128 = vlog2.pop %v123
    %v129 = vmul.f32 %v128, 0.6931472
    %v130 = vsub.f32 1.0, %v118
    %v131 = vsub.f32 1.0, %v119
    %v132 = vsub.f32 1.0, %v120
    %v133 = vmul.f32 %v130, %v130
    %v134 = vmul.f32 %v131, %v131
    %v135 = vmul.f32 %v132, %v132
    %v136 = vmul.f32 %v133, %v133
    %v137 = vmul.f32 %v134, %v134
    %v138 = vmul.f32 %v135, %v135
    %v139 = vsel %vm115, %v130, %v136
    %v140 = vsel %vm116, %v131, %v137
    %v141 = vsel %vm117, %v132, %v138
    %v142 = vmul.f32 %v125, %v139
    %v143 = vmul.f32 %v127, %v140
    %v144 = vmul.f32 %v129, %v141
    %s145 = smul.u32 0, 24
    %v146 = vlaneseq
    %v147 = vshrl.u32 %v146, 7
    %v148 = vadd.s32 %v147, 8
    %v149 = vadd.s32 %v147, 16
    %v150 = vstv %s145
    %v151 = vadd.s32 %v150, %v147
    %v152 = vadd.s32 %v150, %v148
    %v153 = vadd.s32 %v150, %v149
    %vm154 = vcmp.lt.s32.totalorder %v151, 20
    %vm155 = vcmp.lt.s32.totalorder %v152, 20
    %vm156 = vcmp.lt.s32.totalorder %v153, 20
    %v157 = vsel %vm154, 1, 0
    %v158 = vsel %vm155, 1, 0
    %v159 = vsel %vm156, 1, 0
    %vm160 = vcmp.eq.s32.totalorder %v157, 1
    %vm161 = vcmp.eq.s32.totalorder %v158, 1
    %vm162 = vcmp.eq.s32.totalorder %v159, 1
    %v163 = vsel %vm160, %v142, 0.0
    %v164 = vsel %vm161, %v143, 0.0
    %v165 = vsel %vm162, %v144, 0.0
    %v166 = vadd.f32 %v163, %v164
    %v167 = vadd.f32 %v166, %v165
    %168 = vst [vmem:[%s2] sm:$0xff] %v167
    // Predicated region
    $region18: #{asymmetric_loss.1} parent=1 // pred_check
      _
    $region19: #{asymmetric_loss.1} parent=1 // pred_check_branch
      %170 = sbr.rel (0) target = $region21
    $region20: #{asymmetric_loss.1} parent=1 // pred_region
      _
    $region21: #{asymmetric_loss.1} parent=1 // pred_fallthru
      _
    // Predicated region
    $region22: #{asymmetric_loss.1} parent=1 // pred_check
      _
    $region23: #{asymmetric_loss.1} parent=1 // pred_check_branch
      %172 = sbr.rel (0) target = $region25
    $region24: #{asymmetric_loss.1} parent=1 // pred_region
      _
    $region25: #{asymmetric_loss.1} parent=1 // pred_fallthru
      _
    %173 = vsyncpa [#allocation3], 1
    %174 = vsyncpa [#allocation5], 1

</llo_original>
